<compile_context>
chip_gen: v7x
topology: tpu7x:2x2x1
jax: 0.10.0
libtpu: 0.0.40
codegen_flags: <defaults>
</compile_context>

<pallas_src>
import jax
import jax.numpy as jnp
from jax.experimental import pallas as pl
from jax.experimental.pallas import tpu as pltpu


def _round_up(x, m):
    return (x + m - 1) // m * m


# ----------------------------- kernels --------------------------------------

def _linear_kernel_full_k(x_ref, w_ref, b_ref, o_ref):
    # x_ref: (tm, Kp) bf16 ; w_ref: (Kp, tn) bf16 ; b_ref: (1, tn) f32
    acc = jnp.dot(x_ref[...], w_ref[...], preferred_element_type=jnp.float32)
    o_ref[...] = (acc + b_ref[...]).astype(o_ref.dtype)


def _linear_kernel_k_tiled(x_ref, w_ref, b_ref, o_ref, acc_ref):
    # x_ref: (tm, tk) ; w_ref: (tk, tn) ; acc_ref: (tm, tn) f32 resident over k
    k = pl.program_id(2)

    @pl.when(k == 0)
    def _():
        acc_ref[...] = jnp.zeros_like(acc_ref)

    acc_ref[...] += jnp.dot(x_ref[...], w_ref[...],
                            preferred_element_type=jnp.float32)

    @pl.when(k == pl.num_programs(2) - 1)
    def _():
        o_ref[...] = (acc_ref[...] + b_ref[...]).astype(o_ref.dtype)


# --------------------------- tile selection ----------------------------------

def _vmem_budget_and_limit():
    """Generation-aware VMEM budget (for tile sizing) and scoped-VMEM limit."""
    try:
        cap = int(pltpu.get_tpu_info().vmem_capacity_bytes)
    except Exception:
        cap = 64 * 1024 * 1024  # conservative: v7x has 64 MiB per TensorCore
    budget = min(cap // 2, 64 * 1024 * 1024)          # v5e/v6e: 64 MiB, v7x: 32 MiB
    limit = min(budget + 16 * 1024 * 1024, (cap * 3) // 4)
    return budget, limit


def _choose_tiles(m, n, k, in_bytes, out_bytes, budget):
    """Pick (tm, tn, tk, full_k). Tiles are lane/sublane aligned."""
    tm = min(1024, _round_up(m, 16))
    tn = min(1024, _round_up(n, 128))
    k_pad = _round_up(k, 128)

    # Full-K path: double-buffered x & w blocks + double-buffered out + bias.
    full_k_bytes = (2 * (tm + tn) * k_pad * in_bytes
                    + 2 * tm * tn * out_bytes
                    + 2 * tn * 4)
    if full_k_bytes <= budget:
        return tm, tn, k_pad, True

    # K-tiled path: f32 accumulator + double-buffered out + bias are fixed;
    # spend the rest on the largest tk (multiple of 512, capped at 2048).
    fixed = tm * tn * 4 + 2 * tm * tn * out_bytes + 2 * tn * 4
    avail = budget - fixed
    tk = avail // (2 * (tm + tn) * in_bytes)
    tk = (tk // 512) * 512
    tk = max(512, min(tk, 2048))
    tk = min(tk, _round_up(k, 512))
    return tm, tn, tk, False


# ------------------------------ wrapper ---------------------------------------

def linear_forward(x, weight, bias=None, *, compute_dtype=jnp.bfloat16,
                   out_dtype=None, vmem_budget_bytes=None):
    """y = x @ weight.T + bias over the last axis of x.

    x:      [..., in_features]
    weight: [out_features, in_features]   (torch nn.Linear layout)
    bias:   [out_features] or None
    """
    out_features, in_features = weight.shape
    assert x.shape[-1] == in_features

    lead_shape = x.shape[:-1]
    m = 1
    for d in lead_shape:
        m *= d

    out_dtype = x.dtype if out_dtype is None else out_dtype
    out_bytes = jnp.dtype(out_dtype).itemsize
    in_bytes = jnp.dtype(compute_dtype).itemsize

    budget, vmem_limit = _vmem_budget_and_limit()
    if vmem_budget_bytes is not None:
        budget = vmem_budget_bytes

    tm, tn, tk, full_k = _choose_tiles(m, out_features, in_features,
                                       in_bytes, out_bytes, budget)
    m_pad = _round_up(m, tm)
    n_pad = _round_up(out_features, tn)
    k_pad = tk if full_k else _round_up(in_features, tk)

    # ---- x: cast / pad only when needed (avoid extra HBM passes) ----
    x2d = x.reshape(m, in_features)
    if x2d.dtype != compute_dtype:
        x2d = x2d.astype(compute_dtype)
    if m_pad != m or k_pad != in_features:
        x2d = jnp.pad(x2d, ((0, m_pad - m), (0, k_pad - in_features)))

    # ---- weight: one-time [out,in] -> [in,out] transpose so the kernel does a
    # standard (K,N) contraction (no per-k-step XLU transpose of the tile) ----
    wt = weight.T
    if wt.dtype != compute_dtype:
        wt = wt.astype(compute_dtype)
    if k_pad != in_features or n_pad != out_features:
        wt = jnp.pad(wt, ((0, k_pad - in_features), (0, n_pad - out_features)))

    # ---- bias (f32 row) ----
    if bias is None:
        b2d = jnp.zeros((1, n_pad), dtype=jnp.float32)
    else:
        b = bias.astype(jnp.float32)
        if n_pad != out_features:
            b = jnp.pad(b, (0, n_pad - out_features))
        b2d = b.reshape(1, n_pad)

    cost = pl.CostEstimate(
        flops=2 * m_pad * n_pad * k_pad,
        transcendentals=0,
        bytes_accessed=(m_pad * k_pad * in_bytes
                        + n_pad * k_pad * in_bytes
                        + m_pad * n_pad * out_bytes
                        + n_pad * 4),
    )

    if full_k:
        grid = (m_pad // tm, n_pad // tn)
        out = pl.pallas_call(
            _linear_kernel_full_k,
            out_shape=jax.ShapeDtypeStruct((m_pad, n_pad), out_dtype),
            grid_spec=pltpu.PrefetchScalarGridSpec(
                num_scalar_prefetch=0,
                grid=grid,
                in_specs=[
                    pl.BlockSpec((tm, k_pad), lambda i, j: (i, 0)),   # x
                    pl.BlockSpec((k_pad, tn), lambda i, j: (0, j)),   # W^T [K, N]
                    pl.BlockSpec((1, tn), lambda i, j: (0, j)),       # bias
                ],
                out_specs=pl.BlockSpec((tm, tn), lambda i, j: (i, j)),
            ),
            compiler_params=pltpu.CompilerParams(
                dimension_semantics=("parallel", "parallel"),
                vmem_limit_bytes=vmem_limit,
            ),
            cost_estimate=cost,
        )(x2d, wt, b2d)
    else:
        grid = (m_pad // tm, n_pad // tn, k_pad // tk)
        out = pl.pallas_call(
            _linear_kernel_k_tiled,
            out_shape=jax.ShapeDtypeStruct((m_pad, n_pad), out_dtype),
            grid_spec=pltpu.PrefetchScalarGridSpec(
                num_scalar_prefetch=0,
                grid=grid,
                in_specs=[
                    pl.BlockSpec((tm, tk), lambda i, j, k: (i, k)),   # x
                    pl.BlockSpec((tk, tn), lambda i, j, k: (k, j)),   # W^T [K, N]
                    pl.BlockSpec((1, tn), lambda i, j, k: (0, j)),    # bias
                ],
                out_specs=pl.BlockSpec((tm, tn), lambda i, j, k: (i, j)),
                scratch_shapes=[pltpu.VMEM((tm, tn), jnp.float32)],
            ),
            compiler_params=pltpu.CompilerParams(
                dimension_semantics=("parallel", "parallel", "arbitrary"),
                vmem_limit_bytes=vmem_limit,
            ),
            cost_estimate=cost,
        )(x2d, wt, b2d)

    if m_pad != m or n_pad != out_features:
        out = out[:m, :out_features]
    return out.reshape(*lead_shape, out_features)


def init_linear_params(key, in_features, out_features, dtype=jnp.float32):
    """Parameter init matching the module's __init__.

    weight: xavier_normal_  -> N(0, std^2), std = sqrt(2 / (fan_in + fan_out))
    bias:   torch default   -> U(-1/sqrt(fan_in), 1/sqrt(fan_in))
    """
    kw, kb = jax.random.split(key)
    std = (2.0 / (in_features + out_features)) ** 0.5
    weight = std * jax.random.normal(kw, (out_features, in_features), dtype=dtype)
    bound = 1.0 / (in_features ** 0.5)
    bias = jax.random.uniform(
        kb, (out_features,), dtype=dtype, minval=-bound, maxval=bound
    )
    return weight, bias


if __name__ == "__main__":
    key = jax.random.PRNGKey(0)
    k_x, k_p, k_x2, k_p2 = jax.random.split(key, 4)

    # Test 1: small module-consistent shapes (exercises the full-K, no-scratch path)
    batch, seq, in_features, out_features = 2, 8, 32, 64
    x = jax.random.normal(k_x, (batch, seq, in_features), dtype=jnp.float32)
    weight, bias = init_linear_params(k_p, in_features, out_features)

    y = jax.block_until_ready(linear_forward(x, weight, bias))
    y_ref = x @ weight.T + bias
    assert y.shape == (batch, seq, out_features)
    assert jnp.allclose(y, y_ref, atol=5e-2, rtol=5e-2), (
        float(jnp.max(jnp.abs(y - y_ref))))

    # Test 2: force the K-tiled accumulator path on small shapes by shrinking the
    # tile-selection budget (kernel still runs with the normal VMEM limit).
    in2, out2 = 1200, 64
    x2 = jax.random.normal(k_x2, (batch, seq, in2), dtype=jnp.float32)
    w2, b2 = init_linear_params(k_p2, in2, out2)
    y2 = jax.block_until_ready(
        linear_forward(x2, w2, b2, vmem_budget_bytes=60_000))
    y2_ref = x2 @ w2.T + b2
    assert y2.shape == (batch, seq, out2)
    assert jnp.allclose(y2, y2_ref, atol=8e-2, rtol=8e-2), (
        float(jnp.max(jnp.abs(y2 - y2_ref))))

    print("KERNEL_OK")
</pallas_src>

<mosaic_0001>
module attributes {stable_mosaic.version = 11 : i64} {
  func.func @_linear_kernel_full_k(%arg0: i32, %arg1: i32, %arg2: memref<16x128xbf16, #tpu.memory_space<vmem>>, %arg3: memref<128x128xbf16, #tpu.memory_space<vmem>>, %arg4: memref<1x128xf32, #tpu.memory_space<vmem>>, %arg5: memref<16x128xf32, #tpu.memory_space<vmem>>) attributes {dimension_semantics = [#tpu.dimension_semantics<parallel>, #tpu.dimension_semantics<parallel>], iteration_bounds = array<i64: 1, 1>, scalar_prefetch = 0 : i64, scratch_operands = 0 : i64, tpu.core_type = #tpu.core_type<tc>, window_params = [{transform_indices = @transform_0, window_bounds = array<i64: 16, 128>}, {transform_indices = @transform_1, window_bounds = array<i64: 128, 128>}, {transform_indices = @transform_2, window_bounds = array<i64: 1, 128>}, {transform_indices = @transform_3, window_bounds = array<i64: 16, 128>}]} {
    %c0 = arith.constant 0 : index
    %c0_0 = arith.constant 0 : index
    %0 = vector.load %arg2[%c0, %c0_0] : memref<16x128xbf16, #tpu.memory_space<vmem>>, vector<16x128xbf16>
    %c0_1 = arith.constant 0 : index
    %c0_2 = arith.constant 0 : index
    %1 = vector.load %arg3[%c0_1, %c0_2] : memref<128x128xbf16, #tpu.memory_space<vmem>>, vector<128x128xbf16>
    %cst = arith.constant dense<0.000000e+00> : vector<16x128xf32>
    %2 = tpu.matmul %0, %1, %cst {dimension_numbers = #tpu.dot_dimension_numbers<[1], [0], [0], [1], [0, 0, 1, 1], [], []>} : vector<16x128xbf16>, vector<128x128xbf16>, vector<16x128xf32> -> vector<16x128xf32>
    %c0_3 = arith.constant 0 : index
    %c0_4 = arith.constant 0 : index
    %3 = vector.load %arg4[%c0_3, %c0_4] : memref<1x128xf32, #tpu.memory_space<vmem>>, vector<1x128xf32>
    %4 = vector.broadcast %3 : vector<1x128xf32> to vector<16x128xf32>
    %5 = arith.addf %2, %4 : vector<16x128xf32>
    %c0_5 = arith.constant 0 : index
    %c0_6 = arith.constant 0 : index
    %6 = vector.load %arg5[%c0_5, %c0_6] : memref<16x128xf32, #tpu.memory_space<vmem>>, vector<16x128xf32>
    tpu.vector_store %arg5[%c0_5, %c0_6], %5 {strides = array<i32>} : memref<16x128xf32, #tpu.memory_space<vmem>>, vector<16x128xf32>,
    return
  }
  func.func @transform_0(%arg0: i32, %arg1: i32) -> (i32, i32) {
    %c0_i32 = arith.constant 0 : i32
    %c0_i32_0 = arith.constant 0 : i32
    return %arg0, %c0_i32 : i32, i32
  }
  func.func @transform_1(%arg0: i32, %arg1: i32) -> (i32, i32) {
    %c0_i32 = arith.constant 0 : i32
    %c0_i32_0 = arith.constant 0 : i32
    return %c0_i32, %arg1 : i32, i32
  }
  func.func @transform_2(%arg0: i32, %arg1: i32) -> (i32, i32) {
    %c0_i32 = arith.constant 0 : i32
    %c0_i32_0 = arith.constant 0 : i32
    return %c0_i32, %arg1 : i32, i32
  }
  func.func @transform_3(%arg0: i32, %arg1: i32) -> (i32, i32) {
    %c0_i32 = arith.constant 0 : i32
    return %arg0, %arg1 : i32, i32
  }
}

</mosaic_0001>

<llo_original>
// kernel: tpu_custom_call.1
$region0: #{tpu_custom_call.1}
  #allocation0 [shape = 'u32[]', space=smem, size = 0x4, offset = 0x4, fixed_abs, tag = 'smem constant byte address 0x4 - core index']
  #allocation1 [shape = 'u32[144,128]{1,0:T(1,128)}', space=vmem, size = 0x12000, scoped, tag = 'internal scratch']
  %s0 = inlined_call_operand.hbm [shape: bf16[16,128], index: 0, kind: input, shape index: {}]
  %s1 = inlined_call_operand.hbm [shape: bf16[128,128], index: 1, kind: input, shape index: {}]
  %s2 = inlined_call_operand.vmem [shape: f32[1,128], index: 2, kind: input, shape index: {}]
  %s3 = inlined_call_operand.hbm [shape: f32[16,128], index: 3, kind: output, shape index: {}]
  %s4 = sld [smem:[#allocation0]]
  $region30: #{tpu_custom_call.1} parent=0
    _
  %s6 = ssub.s32 1, %s4
  %s7 = scalar_select 0, %s6, %s4
  $region1: #{tpu_custom_call.1} parent=0
    #allocation2 [shape = 'u8[4096]{0}', space=vmem, size = 0x1000, scoped, tag = 'input window, operand 0, single buffered']
    #allocation3 [shape = 's32[1]{0}', space=sflag, size = 0x4, scoped, tag = 'scoped memory for tpu_custom_call.1']
    #allocation4 [shape = 's32[1]{0}', space=sflag, size = 0x4, scoped, tag = 'scoped memory for tpu_custom_call.1']
    #allocation5 [shape = 'u8[32768]{0}', space=vmem, size = 0x8000, scoped, tag = 'input window, operand 1, single buffered']
    #allocation6 [shape = 's32[1]{0}', space=sflag, size = 0x4, scoped, tag = 'scoped memory for tpu_custom_call.1']
    #allocation7 [shape = 'u8[8192]{0}', space=vmem, size = 0x2000, scoped, tag = 'output window, operand 0, single buffered']
    %8 = vsyncpa [#allocation3], 0
    %9 = vsyncpa [#allocation6], 0
    %10 = vsyncpa [#allocation4], 0
    // Predicated region
    $region2: #{tpu_custom_call.1} parent=1 // pred_check
      _
    $region3: #{tpu_custom_call.1} parent=1 // pred_check_branch
      %12 = sbr.rel (0) target = $region5
    $region4: #{tpu_custom_call.1} parent=1 // pred_region
      %s14 = ssub.s32 128, 128
      %15 = vsyncadd [#allocation3], %s14
      %s16 = sshll.u32 [#allocation2], 4
      %s17 = int_to_ptr.vmem [resolvable:$true] %s16
      %22 = dma.hbm_to_vmem [thread:$0]  %s0, 128, %s17, [#allocation3], 64, 64, 4
    $region5: #{tpu_custom_call.1} parent=1 // pred_fallthru
      _
    // Predicated region
    $region6: #{tpu_custom_call.1} parent=1 // pred_check
      _
    $region7: #{tpu_custom_call.1} parent=1 // pred_check_branch
      %24 = sbr.rel (0) target = $region9
    $region8: #{tpu_custom_call.1} parent=1 // pred_region
      %s26 = ssub.s32 1024, 1024
      %27 = vsyncadd [#allocation6], %s26
      %s28 = sshll.u32 [#allocation5], 4
      %s29 = int_to_ptr.vmem [resolvable:$true] %s28
      %34 = dma.hbm_to_vmem [thread:$0]  %s1, 1024, %s29, [#allocation6], 64, 64, 4
    $region9: #{tpu_custom_call.1} parent=1 // pred_fallthru
      _
    // Predicated region
    $region10: #{tpu_custom_call.1} parent=1 // pred_check
      _
    $region11: #{tpu_custom_call.1} parent=1 // pred_check_branch
      %36 = sbr.rel (0) target = $region13
    $region12: #{tpu_custom_call.1} parent=1 // pred_region
      _
    $region13: #{tpu_custom_call.1} parent=1 // pred_fallthru
      _
    // Predicated region
    $region14: #{tpu_custom_call.1} parent=1 // pred_check
      _
    $region15: #{tpu_custom_call.1} parent=1 // pred_check_branch
      %38 = sbr.rel (0) target = $region17
    $region16: #{tpu_custom_call.1} parent=1 // pred_region
      %39 = dma.done [#allocation3], 128
    $region17: #{tpu_custom_call.1} parent=1 // pred_fallthru
      _
    // Predicated region
    $region18: #{tpu_custom_call.1} parent=1 // pred_check
      _
    $region19: #{tpu_custom_call.1} parent=1 // pred_check_branch
      %41 = sbr.rel (0) target = $region21
    $region20: #{tpu_custom_call.1} parent=1 // pred_region
      %42 = dma.done [#allocation6], 1024
    $region21: #{tpu_custom_call.1} parent=1 // pred_fallthru
      _
    %v44 = vld [vmem:[#allocation2] sm:$0xf]
    %v45 = vld [vmem:[#allocation2 + $0x4] sm:$0xf]
    %v46 = vld [vmem:[#allocation5] sm:$0xf]
    %v47 = vld [vmem:[#allocation5 + $0x4] sm:$0xf]
    %v48 = vld [vmem:[#allocation5 + $0x8] sm:$0xf]
    %v49 = vld [vmem:[#allocation5 + $0xc] sm:$0xf]
    %v50 = vld [vmem:[#allocation5 + $0x10] sm:$0xf]
    %v51 = vld [vmem:[#allocation5 + $0x14] sm:$0xf]
    %v52 = vld [vmem:[#allocation5 + $0x18] sm:$0xf]
    %v53 = vld [vmem:[#allocation5 + $0x1c] sm:$0xf]
    %v54 = vld [vmem:[#allocation5 + $0x20] sm:$0xf]
    %v55 = vld [vmem:[#allocation5 + $0x24] sm:$0xf]
    %v56 = vld [vmem:[#allocation5 + $0x28] sm:$0xf]
    %v57 = vld [vmem:[#allocation5 + $0x2c] sm:$0xf]
    %v58 = vld [vmem:[#allocation5 + $0x30] sm:$0xf]
    %v59 = vld [vmem:[#allocation5 + $0x34] sm:$0xf]
    %v60 = vld [vmem:[#allocation5 + $0x38] sm:$0xf]
    %v61 = vld [vmem:[#allocation5 + $0x3c] sm:$0xf]
    %v62 = vld [vmem:[%s2] sm:$0x1]
    %v64 = vlaneseq
    %v65 = vshrl.u32 %v64, 7
    %v66 = vsub.s32 0, %v65
    %v67 = vrot.slane %v62, %v66
    %v71 = vunpack.c.l.b16 %v44
    %v72 = vunpack.c.l.b16 %v45
    %v73 = vpack.c.b16 %v72, %v71
    %v91 = vunpack.c.l.b16 %v46
    %v92 = vunpack.c.l.b16 %v47
    %v93 = vunpack.c.l.b16 %v48
    %v94 = vunpack.c.l.b16 %v49
    %v95 = vunpack.c.l.b16 %v50
    %v96 = vunpack.c.l.b16 %v51
    %v97 = vunpack.c.l.b16 %v52
    %v98 = vunpack.c.l.b16 %v53
    %v99 = vunpack.c.l.b16 %v54
    %v100 = vunpack.c.l.b16 %v55
    %v101 = vunpack.c.l.b16 %v56
    %v102 = vunpack.c.l.b16 %v57
    %v103 = vunpack.c.l.b16 %v58
    %v104 = vunpack.c.l.b16 %v59
    %v105 = vunpack.c.l.b16 %v60
    %v106 = vunpack.c.l.b16 %v61
    %v107 = vpack.c.b16 %v92, %v91
    %v108 = vpack.c.b16 %v94, %v93
    %v109 = vpack.c.b16 %v96, %v95
    %v110 = vpack.c.b16 %v98, %v97
    %v111 = vpack.c.b16 %v100, %v99
    %v112 = vpack.c.b16 %v102, %v101
    %v113 = vpack.c.b16 %v104, %v103
    %v114 = vpack.c.b16 %v106, %v105
    %123 = vmatprep.subr.bf16.mxu0 0
    %124 = vmatpush1.bf16.msra.mxu0 %v107
    %125 = vmatprep.subr.bf16.mxu0 0
    %126 = vmatpush1.bf16.msra.mxu0 %v108
    %127 = vmatprep.subr.bf16.mxu0 0
    %128 = vmatpush1.bf16.msra.mxu0 %v109
    %129 = vmatprep.subr.bf16.mxu0 0
    %130 = vmatpush1.bf16.msra.mxu0 %v110
    %131 = vmatprep.subr.bf16.mxu0 0
    %132 = vmatpush1.bf16.msra.mxu0 %v111
    %133 = vmatprep.subr.bf16.mxu0 0
    %134 = vmatpush1.bf16.msra.mxu0 %v112
    %135 = vmatprep.subr.bf16.mxu0 0
    %136 = vmatpush1.bf16.msra.mxu0 %v113
    %137 = vmatprep.subr.bf16.mxu0 0
    %138 = vmatpush1.bf16.msra.mxu0 %v114
    %139 = vmatprep.subr.bf16.mxu0 0
    %140 = vmatpush1.bf16.msra.mxu0 0
    %141 = vmatprep.subr.bf16.mxu0 0
    %142 = vmatpush1.bf16.msra.mxu0 0
    %143 = vmatprep.subr.bf16.mxu0 0
    %144 = vmatpush1.bf16.msra.mxu0 0
    %145 = vmatprep.subr.bf16.mxu0 0
    %146 = vmatpush1.bf16.msra.mxu0 0
    %147 = vmatprep.subr.bf16.mxu0 0
    %148 = vmatpush1.bf16.msra.mxu0 0
    %149 = vmatprep.subr.bf16.mxu0 0
    %150 = vmatpush1.bf16.msra.mxu0 0
    %151 = vmatprep.subr.bf16.mxu0 0
    %152 = vmatpush1.bf16.msra.mxu0 0
    %153 = vmatprep.subr.bf16.mxu0 0
    %154 = vmatpush1.bf16.msra.mxu0 0
    %155 = vmatprep.mubr.bf16.mxu0 0
    %156 = vmatmul.mubr.bf16.gmra.mrb[0].mxu0 %v73
    %v157 = vpop.f32.mrb[0].mxu0
    %v158 = vadd.f32 %v67, %v157
    %v159 = vpop.f32.mrb[0].mxu0
    %v160 = vpop.f32.mrb[0].mxu0
    %v161 = vadd.f32 %v67, %v160
    %v162 = vpop.f32.mrb[0].mxu0
    %163 = vdwg.mxu0
    %164 = vst [vmem:[#allocation7] sm:$0xff] %v158
    %165 = vst [vmem:[#allocation7 + $0x8] sm:$0xff] %v161
    // Predicated region
    $region22: #{tpu_custom_call.1} parent=1 // pred_check
      _
    $region23: #{tpu_custom_call.1} parent=1 // pred_check_branch
      %167 = sbr.rel (0) target = $region25
    $region24: #{tpu_custom_call.1} parent=1 // pred_region
      %s169 = ssub.s32 256, 256
      %170 = vsyncadd [#allocation4], %s169
      %s171 = sshll.u32 [#allocation7], 4
      %s172 = int_to_ptr.vmem [resolvable:$true] %s171
      %177 = dma.vmem_to_hbm [thread:$0]  %s172, 256, %s3, [#allocation4], 128, 128, 8
    $region25: #{tpu_custom_call.1} parent=1 // pred_fallthru
      _
    // Predicated region
    $region26: #{tpu_custom_call.1} parent=1 // pred_check
      _
    $region27: #{tpu_custom_call.1} parent=1 // pred_check_branch
      %179 = sbr.rel (0) target = $region29
    $region28: #{tpu_custom_call.1} parent=1 // pred_region
      %180 = dma.done [#allocation4], 256
    $region29: #{tpu_custom_call.1} parent=1 // pred_fallthru
      _
    %181 = vsyncpa [#allocation3], 1
    %182 = vsyncpa [#allocation6], 1
    %183 = vsyncpa [#allocation4], 1

</llo_original>
